<compile_context>
chip_gen: v7x
topology: tpu7x:2x2x1
jax: 0.10.0
libtpu: 0.0.40
codegen_flags: <defaults>
</compile_context>

<pallas_src>
import functools
import math
import numpy as np
import jax
import jax.numpy as jnp
from jax.experimental import pallas as pl
from jax.experimental.pallas import tpu as pltpu

VMEM = pltpu.MemorySpace.VMEM
SMEM = pltpu.MemorySpace.SMEM


# ----------------------------- tile helpers -----------------------------

def _pick_tile(d, pref):
    """pref if it exactly divides d, else the whole dim (small problems -> no grid)."""
    return pref if (d >= pref and d % pref == 0) else d


def _row_tile(n, pref=256):
    """Largest multiple of 16 <= pref that divides n (16: bf16-friendly sublanes)."""
    pref = max(16, (pref // 16) * 16)
    if n <= pref:
        return n
    t = pref
    while t >= 16:
        if n % t == 0:
            return t
        t -= 16
    return n  # TODO(synk): pad N to a multiple of 16 for arbitrary graph sizes


# ----------------------------- tiled linear (P1 + P3) -----------------------------

def _matmul_kernel(x_ref, w_ref, b_ref, o_ref, acc_ref):
    @pl.when(pl.program_id(2) == 0)
    def _():
        acc_ref[...] = jnp.zeros_like(acc_ref)

    acc_ref[...] += jnp.dot(x_ref[...], w_ref[...],
                            preferred_element_type=jnp.float32)

    @pl.when(pl.program_id(2) == pl.num_programs(2) - 1)
    def _():
        o_ref[...] = acc_ref[...] + b_ref[...]


def linear(x, w, b=None, *, tm=256, tn=256, tk=512):
    """y = x @ w + b (bias optional), tiled with an f32 VMEM accumulator."""
    x = x.astype(jnp.float32)
    w = w.astype(jnp.float32)
    M, K = x.shape
    Nout = w.shape[1]
    if b is None:
        b = jnp.zeros((1, Nout), jnp.float32)
    else:
        b = b.reshape(1, Nout).astype(jnp.float32)
    tm = _pick_tile(M, tm)
    tn = _pick_tile(Nout, tn)
    tk = _pick_tile(K, tk)
    return pl.pallas_call(
        _matmul_kernel,
        out_shape=jax.ShapeDtypeStruct((M, Nout), jnp.float32),
        grid=(M // tm, Nout // tn, K // tk),
        in_specs=[pl.BlockSpec((tm, tk), lambda i, j, k: (i, k)),
                  pl.BlockSpec((tk, tn), lambda i, j, k: (k, j)),
                  pl.BlockSpec((1, tn), lambda i, j, k: (0, j))],
        out_specs=pl.BlockSpec((tm, tn), lambda i, j, k: (i, j)),
        scratch_shapes=[pltpu.VMEM((tm, tn), jnp.float32)],
        compiler_params=pltpu.CompilerParams(
            dimension_semantics=("parallel", "parallel", "arbitrary")),
    )(x, w, b)


# ----------------------------- l2 normalization -----------------------------

def _l2norm_kernel(x_ref, o_ref):
    x = x_ref[...]
    n = jnp.sqrt(jnp.sum(x * x, axis=1, keepdims=True))
    o_ref[...] = x * pl.reciprocal(jnp.maximum(n, 1e-12), approx=True)


def l2_norm(x):
    """x / max(||x||_2 along dim=1, 1e-12)  -- matches myGAT.l2_norm."""
    return pl.pallas_call(
        _l2norm_kernel,
        out_shape=jax.ShapeDtypeStruct(x.shape, jnp.float32),
        in_specs=[pl.BlockSpec(memory_space=VMEM)],
        out_specs=pl.BlockSpec(memory_space=VMEM),
    )(x.astype(jnp.float32))


# ----------------------------- attention coefficients -----------------------------

def _coeff_kernel(ft_ref, al_ref, ar_ref, el_ref, er_ref):
    # ft: (H, N, D), al/ar: (H, 1, D)  ->  el/er: (H, N, 1)
    ft = ft_ref[...]
    el_ref[...] = jnp.sum(ft * al_ref[...], axis=-1, keepdims=True)
    er_ref[...] = jnp.sum(ft * ar_ref[...], axis=-1, keepdims=True)


def attn_coeffs(ft, al, ar):
    H, N, _ = ft.shape
    return pl.pallas_call(
        _coeff_kernel,
        out_shape=(jax.ShapeDtypeStruct((H, N, 1), jnp.float32),
                   jax.ShapeDtypeStruct((H, N, 1), jnp.float32)),
        in_specs=[pl.BlockSpec(memory_space=VMEM)] * 3,
        out_specs=(pl.BlockSpec(memory_space=VMEM),
                   pl.BlockSpec(memory_space=VMEM)),
    )(ft, al, ar)


# ----------------------------- fused masked edge-softmax + aggregation -----------------------------

def _gat_agg_kernel(*refs, num_heads, num_etypes, out_feats, negative_slope,
                    alpha, use_res_attn, add_residual, apply_elu, return_attn):
    """One dst-row tile: edge-type bias lookup, masked softmax over src, attn @ ft,
    optional residual-attention mix / residual value / ELU."""
    it = iter(refs)
    ee_ref = next(it)                    # SMEM (H, R) f32 edge-type bias table
    ft_ref = next(it)                    # VMEM (H, N, D) projected features (full)
    el_ref = next(it)                    # VMEM (H, 1, N) per-src coefficient (full)
    er_ref = next(it)                    # VMEM (H, tq, 1) per-dst coefficient (tile)
    et_ref = next(it)                    # VMEM (tq, N) int32 etype code (-1 = no edge)
    res_attn_ref = next(it) if use_res_attn else None   # (H, tq, N) bf16
    resval_ref = next(it) if add_residual else None     # (tq, H*D) f32
    out_ref = next(it)                   # (tq, H*D) f32
    attn_ref = next(it) if return_attn else None        # (H, tq, N) bf16

    D = out_feats
    et = et_ref[...]
    valid = et >= 0

    for h in range(num_heads):           # heads unrolled (small H)
        # edge-type bias via R selects against the SMEM scalar table
        ee = jnp.zeros(et.shape, jnp.float32)
        for r in range(num_etypes):
            ee = jnp.where(et == r, ee_ref[h, r], ee)

        e = er_ref[h] + el_ref[h] + ee                            # (tq,1)+(1,N)+(tq,N)
        e = jnp.where(e > 0, e, negative_slope * e)               # LeakyReLU
        e = jnp.where(valid, e, -1e30)                            # mask non-edges (f32)
        m = jnp.max(e, axis=1, keepdims=True)
        p = jnp.where(valid, jnp.exp(e - m), 0.0)
        s = jnp.sum(p, axis=1, keepdims=True)
        # guarded denominator (zero-in-degree rows -> 0, not NaN); EUP reciprocal
        attn = p * pl.reciprocal(jnp.maximum(s, 1e-30), approx=True)
        if use_res_attn:
            attn = attn * (1.0 - alpha) + res_attn_ref[h].astype(jnp.float32) * alpha
        if return_attn:
            attn_ref[h] = attn.astype(jnp.bfloat16)

        rst = jnp.dot(attn, ft_ref[h], preferred_element_type=jnp.float32)  # (tq, D)
        if add_residual:
            rst = rst + resval_ref[:, h * D:(h + 1) * D]
        if apply_elu:
            rst = jnp.where(rst > 0, rst, jnp.exp(rst) - 1.0)     # F.elu
        out_ref[:, h * D:(h + 1) * D] = rst


def gat_conv(lp, h, etype_code, res_attn, *, num_heads, out_feats, negative_slope,
             alpha, residual, apply_elu, return_attn, row_block=256):
    """One myGATConv layer (eval mode). Returns (out (N, H*D) f32, attn (H,N,N) bf16|None)."""
    N = h.shape[0]
    H, D = num_heads, out_feats
    HD = H * D
    R = int(lp['edge_emb'].shape[0])

    # --- node projection; fuse fc + res_fc into one matmul when both exist ---
    if residual and lp.get('W_res') is not None:
        w_cat = jnp.concatenate([lp['W_fc'], lp['W_res']], axis=1)
        proj = linear(h, w_cat)                       # (N, 2*H*D)
        ft_flat, resval = proj[:, :HD], proj[:, HD:]
    else:
        ft_flat = linear(h, lp['W_fc'])               # (N, H*D)
        resval = h.astype(jnp.float32) if residual else None      # identity residual
    ft = ft_flat.reshape(N, H, D).transpose(1, 0, 2)  # (H, N, D)   (layout glue)

    # --- tiny per-(head, edge-type) bias table  ee_t[h, r]  (goes to SMEM) ---
    e = linear(lp['edge_emb'], lp['W_fce'])           # (R, edge_dim*H)
    e = e.reshape(R, H, lp['edge_emb'].shape[1])
    ee_t = jnp.sum(e * lp['attn_e'][None], axis=-1).T.astype(jnp.float32)   # (H, R)

    # --- per-node attention coefficients (VPU reductions, no degenerate matmuls) ---
    al = lp['attn_l'].reshape(H, 1, D).astype(jnp.float32)
    ar = lp['attn_r'].reshape(H, 1, D).astype(jnp.float32)
    el, er = attn_coeffs(ft, al, ar)                  # (H, N, 1) each
    el_row = jnp.transpose(el, (0, 2, 1))             # (H, 1, N)

    use_res_attn = res_attn is not None
    add_residual = residual and (resval is not None)

    tq = _row_tile(N, row_block)
    grid = (N // tq,)

    in_specs = [
        pl.BlockSpec(memory_space=SMEM),                          # ee_t (H,R) scalar table
        pl.BlockSpec((H, N, D), lambda i: (0, 0, 0)),             # ft  (resident)
        pl.BlockSpec((H, 1, N), lambda i: (0, 0, 0)),             # el  (resident)
        pl.BlockSpec((H, tq, 1), lambda i: (0, i, 0)),            # er  (dst-row tile)
        pl.BlockSpec((tq, N), lambda i: (i, 0)),                  # etype code (dst-row tile)
    ]
    args = [ee_t, ft, el_row, er, etype_code]
    if use_res_attn:
        in_specs.append(pl.BlockSpec((H, tq, N), lambda i: (0, i, 0)))
        args.append(res_attn)                                     # bf16 stream
    if add_residual:
        in_specs.append(pl.BlockSpec((tq, HD), lambda i: (i, 0)))
        args.append(resval)

    if return_attn:
        out_shape = (jax.ShapeDtypeStruct((N, HD), jnp.float32),
                     jax.ShapeDtypeStruct((H, N, N), jnp.bfloat16))
        out_specs = (pl.BlockSpec((tq, HD), lambda i: (i, 0)),
                     pl.BlockSpec((H, tq, N), lambda i: (0, i, 0)))
    else:  # last layer: skip the discarded attention writeback entirely
        out_shape = jax.ShapeDtypeStruct((N, HD), jnp.float32)
        out_specs = pl.BlockSpec((tq, HD), lambda i: (i, 0))

    kern = functools.partial(
        _gat_agg_kernel, num_heads=H, num_etypes=R, out_feats=D,
        negative_slope=negative_slope, alpha=alpha,
        use_res_attn=use_res_attn, add_residual=add_residual,
        apply_elu=apply_elu, return_attn=return_attn)

    res = pl.pallas_call(
        kern,
        out_shape=out_shape,
        grid=grid,
        in_specs=in_specs,
        out_specs=out_specs,
        compiler_params=pltpu.CompilerParams(
            dimension_semantics=("parallel",),
            vmem_limit_bytes=48 * 1024 * 1024),
    )(*args)

    if return_attn:
        out, attn = res
        return out, attn
    return res, None


# ----------------------------- DistMult decoder -----------------------------

def _distmult_kernel(left_ref, right_ref, onehot_ref, w_ref, o_ref, *, num_rel):
    """sigmoid( left @ W[r_id] @ right ), relation selected via one-hot (R small)."""
    left = left_ref[...]                                          # (B, D)
    right = right_ref[...]                                        # (B, D)
    oh = onehot_ref[...]                                          # (B, R)
    acc = jnp.zeros((left.shape[0], 1), jnp.float32)
    for r in range(num_rel):
        t = jnp.dot(left, w_ref[r], preferred_element_type=jnp.float32)  # (B, D)
        acc = acc + oh[:, r:r + 1] * jnp.sum(t * right, axis=1, keepdims=True)
    o_ref[...] = 1.0 / (1.0 + jnp.exp(-acc))                      # F.sigmoid


def distmult_sigmoid(left_emb, right_emb, r_onehot, W):
    B = left_emb.shape[0]
    kern = functools.partial(_distmult_kernel, num_rel=W.shape[0])
    out = pl.pallas_call(
        kern,
        out_shape=jax.ShapeDtypeStruct((B, 1), jnp.float32),
        in_specs=[pl.BlockSpec(memory_space=VMEM)] * 4,
        out_specs=pl.BlockSpec(memory_space=VMEM),
    )(left_emb.astype(jnp.float32), right_emb.astype(jnp.float32),
      r_onehot.astype(jnp.float32), W.astype(jnp.float32))
    return out[:, 0]


# ----------------------------- full forward -----------------------------

def mygat_forward(params, features_list, etype_code, left, right, mid, cfg):
    row_block = cfg.get('row_block', 256)
    # per-node-type linear projections, concat along nodes
    hs = [linear(f, p['W'], p['b']) for f, p in zip(features_list, params['fc_list'])]
    h = jnp.concatenate(hs, axis=0)                               # (N, num_hidden)
    emb = [l2_norm(h)]
    res_attn = None
    for l in range(cfg['num_layers']):
        out, res_attn = gat_conv(params['layers'][l], h, etype_code, res_attn,
                                 num_heads=cfg['heads'][l],
                                 out_feats=cfg['num_hidden'],
                                 negative_slope=cfg['negative_slope'],
                                 alpha=cfg['alpha'],
                                 residual=cfg['residual'] and (l != 0),
                                 apply_elu=True,
                                 return_attn=True,
                                 row_block=row_block)
        N = out.shape[0]
        h_mean = jnp.mean(out.reshape(N, cfg['heads'][l], cfg['num_hidden']), axis=1)
        emb.append(l2_norm(h_mean))
        h = out                                                   # == h.flatten(1)
    out, _ = gat_conv(params['layers'][cfg['num_layers']], h, etype_code, res_attn,
                      num_heads=cfg['heads'][-1],
                      out_feats=cfg['num_classes'],
                      negative_slope=cfg['negative_slope'],
                      alpha=cfg['alpha'],
                      residual=cfg['residual'],
                      apply_elu=False,                            # last layer: no activation
                      return_attn=False,                          # attention discarded -> not written
                      row_block=row_block)
    N = out.shape[0]
    logits = jnp.mean(out.reshape(N, cfg['heads'][-1], cfg['num_classes']), axis=1)
    logits = l2_norm(logits)
    emb.append(logits)                                            # inProcessEmb == 'True'
    logits = jnp.concatenate(emb, axis=1)                         # (N, num_classes*(L+2))
    left_emb = logits[left]                                       # gather (glue)
    right_emb = logits[right]
    r_onehot = jax.nn.one_hot(mid, params['decoder_W'].shape[0], dtype=jnp.float32)
    return distmult_sigmoid(left_emb, right_emb, r_onehot, params['decoder_W'])


# ----------------------------- deterministic init -----------------------------

def xavier_normal(key, shape, gain=1.414):
    fan_in = shape[-2] if len(shape) > 1 else shape[-1]
    fan_out = shape[-1]
    std = gain * math.sqrt(2.0 / (fan_in + fan_out))
    return (std * jax.random.normal(key, shape)).astype(jnp.float32)


if __name__ == "__main__":
    cfg = dict(num_layers=2, num_hidden=16, num_classes=16, heads=[2, 2, 2],
               edge_dim=8, num_etypes=3, negative_slope=0.2, alpha=0.05,
               residual=True, row_block=16)          # small row tile -> exercise the grid
    in_dims = [6, 5, 7]
    n_per_type = [12, 10, 10]
    N = sum(n_per_type)                              # 32 (multiple of 16)

    key = jax.random.PRNGKey(0)
    keys = iter(jax.random.split(key, 64))

    features_list = [jax.random.normal(next(keys), (n, d), jnp.float32)
                     for n, d in zip(n_per_type, in_dims)]

    # synthetic dense graph: etype_code[dst, src]; -1 = no edge, self-loops = etype 2
    ety_np = -np.ones((N, N), np.int32)
    for i in range(N):
        ety_np[i, i] = 2
    for i in range(N):
        s, d = (i * 7 + 3) % N, i
        if s != d:
            ety_np[d, s] = i % 2
        s2, d2 = i, (i * 5 + 11) % N
        if s2 != d2:
            ety_np[d2, s2] = (i + 1) % 2
    etype_code = jnp.asarray(ety_np)

    # parameters
    params = {}
    params['fc_list'] = [
        {'W': xavier_normal(next(keys), (d, cfg['num_hidden'])),
         'b': (0.01 * jax.random.normal(next(keys), (cfg['num_hidden'],))).astype(jnp.float32)}
        for d in in_dims]

    H = cfg['heads']
    in_feats_list = [cfg['num_hidden'], cfg['num_hidden'] * H[0], cfg['num_hidden'] * H[1]]
    out_feats_list = [cfg['num_hidden'], cfg['num_hidden'], cfg['num_classes']]
    layers = []
    for l in range(cfg['num_layers'] + 1):
        inf, outf, h = in_feats_list[l], out_feats_list[l], H[l]
        residual_l = cfg['residual'] and (l != 0)
        layers.append({
            'W_fc': xavier_normal(next(keys), (inf, h * outf)),
            'attn_l': xavier_normal(next(keys), (h, outf)),
            'attn_r': xavier_normal(next(keys), (h, outf)),
            'attn_e': xavier_normal(next(keys), (h, cfg['edge_dim'])),
            'edge_emb': jax.random.normal(next(keys), (cfg['num_etypes'], cfg['edge_dim']), jnp.float32),
            'W_fce': xavier_normal(next(keys), (cfg['edge_dim'], cfg['edge_dim'] * h)),
            'W_res': (xavier_normal(next(keys), (inf, h * outf))
                      if (residual_l and inf != h * outf) else None),
        })
    params['layers'] = layers

    dec_dim = cfg['num_classes'] * (cfg['num_layers'] + 2)        # 16 * 4 = 64
    params['decoder_W'] = xavier_normal(next(keys), (cfg['num_etypes'], dec_dim, dec_dim))

    # link-prediction queries
    left = jnp.array([0, 3, 5, 7, 10, 12, 20, 23], jnp.int32)
    right = jnp.array([1, 4, 6, 8, 11, 15, 21, 22], jnp.int32)
    mid = jnp.array([0, 1, 2, 0, 1, 2, 0, 1], jnp.int32)

    scores = mygat_forward(params, features_list, etype_code, left, right, mid, cfg)
    scores = jax.block_until_ready(scores)

    assert scores.shape == (left.shape[0],)
    assert bool(jnp.all(jnp.isfinite(scores)))
    assert bool(jnp.all((scores >= 0.0) & (scores <= 1.0)))
    print("KERNEL_OK")
</pallas_src>

<mosaic_0001>
module attributes {stable_mosaic.version = 11 : i64} {
  func.func @_matmul_kernel(%arg0: i32, %arg1: i32, %arg2: i32, %arg3: memref<12x6xf32, #tpu.memory_space<vmem>>, %arg4: memref<6x16xf32, #tpu.memory_space<vmem>>, %arg5: memref<1x16xf32, #tpu.memory_space<vmem>>, %arg6: memref<12x16xf32, #tpu.memory_space<vmem>>, %arg7: memref<12x16xf32, #tpu.memory_space<vmem>>) attributes {dimension_semantics = [#tpu.dimension_semantics<parallel>, #tpu.dimension_semantics<parallel>, #tpu.dimension_semantics<arbitrary>], iteration_bounds = array<i64: 1, 1, 1>, scalar_prefetch = 0 : i64, scratch_operands = 1 : i64, tpu.core_type = #tpu.core_type<tc>, window_params = [{transform_indices = @transform_0, window_bounds = array<i64: 12, 6>}, {transform_indices = @transform_1, window_bounds = array<i64: 6, 16>}, {transform_indices = @transform_2, window_bounds = array<i64: 1, 16>}, {transform_indices = @transform_3, window_bounds = array<i64: 12, 16>}]} {
    %c0_i32 = arith.constant 0 : i32
    %0 = arith.cmpi eq, %arg2, %c0_i32 : i32
    %1 = arith.extui %0 : i1 to i32
    %c0_i32_0 = arith.constant 0 : i32
    %2 = arith.cmpi ne, %1, %c0_i32_0 : i32
    scf.if %2 {
      %cst_10 = arith.constant 0.000000e+00 : f32
      %12 = vector.broadcast %cst_10 : f32 to vector<12x16xf32>
      %c0_11 = arith.constant 0 : index
      %c0_12 = arith.constant 0 : index
      %13 = vector.load %arg7[%c0_11, %c0_12] : memref<12x16xf32, #tpu.memory_space<vmem>>, vector<12x16xf32>
      tpu.vector_store %arg7[%c0_11, %c0_12], %12 {strides = array<i32>} : memref<12x16xf32, #tpu.memory_space<vmem>>, vector<12x16xf32>,
    } else {
    }
    %c0 = arith.constant 0 : index
    %c0_1 = arith.constant 0 : index
    %3 = vector.load %arg7[%c0, %c0_1] : memref<12x16xf32, #tpu.memory_space<vmem>>, vector<12x16xf32>
    %c0_2 = arith.constant 0 : index
    %c0_3 = arith.constant 0 : index
    %4 = vector.load %arg3[%c0_2, %c0_3] : memref<12x6xf32, #tpu.memory_space<vmem>>, vector<12x6xf32>
    %c0_4 = arith.constant 0 : index
    %c0_5 = arith.constant 0 : index
    %5 = vector.load %arg4[%c0_4, %c0_5] : memref<6x16xf32, #tpu.memory_space<vmem>>, vector<6x16xf32>
    %cst = arith.constant dense<0.000000e+00> : vector<12x16xf32>
    %6 = tpu.matmul %4, %5, %cst {dimension_numbers = #tpu.dot_dimension_numbers<[1], [0], [0], [1], [0, 0, 1, 1], [], []>} : vector<12x6xf32>, vector<6x16xf32>, vector<12x16xf32> -> vector<12x16xf32>
    %7 = arith.addf %3, %6 : vector<12x16xf32>
    %c0_6 = arith.constant 0 : index
    %c0_7 = arith.constant 0 : index
    %8 = vector.load %arg7[%c0_6, %c0_7] : memref<12x16xf32, #tpu.memory_space<vmem>>, vector<12x16xf32>
    tpu.vector_store %arg7[%c0_6, %c0_7], %7 {strides = array<i32>} : memref<12x16xf32, #tpu.memory_space<vmem>>, vector<12x16xf32>,
    %c0_i32_8 = arith.constant 0 : i32
    %9 = arith.cmpi eq, %arg2, %c0_i32_8 : i32
    %10 = arith.extui %9 : i1 to i32
    %c0_i32_9 = arith.constant 0 : i32
    %11 = arith.cmpi ne, %10, %c0_i32_9 : i32
    scf.if %11 {
      %c0_10 = arith.constant 0 : index
      %c0_11 = arith.constant 0 : index
      %12 = vector.load %arg7[%c0_10, %c0_11] : memref<12x16xf32, #tpu.memory_space<vmem>>, vector<12x16xf32>
      %c0_12 = arith.constant 0 : index
      %c0_13 = arith.constant 0 : index
      %13 = vector.load %arg5[%c0_12, %c0_13] : memref<1x16xf32, #tpu.memory_space<vmem>>, vector<1x16xf32>
      %14 = vector.broadcast %13 : vector<1x16xf32> to vector<12x16xf32>
      %15 = arith.addf %12, %14 : vector<12x16xf32>
      %c0_14 = arith.constant 0 : index
      %c0_15 = arith.constant 0 : index
      %16 = vector.load %arg6[%c0_14, %c0_15] : memref<12x16xf32, #tpu.memory_space<vmem>>, vector<12x16xf32>
      tpu.vector_store %arg6[%c0_14, %c0_15], %15 {strides = array<i32>} : memref<12x16xf32, #tpu.memory_space<vmem>>, vector<12x16xf32>,
    } else {
    }
    return
  }
  func.func @transform_0(%arg0: i32, %arg1: i32, %arg2: i32) -> (i32, i32) {
    %c0_i32 = arith.constant 0 : i32
    return %arg0, %arg2 : i32, i32
  }
  func.func @transform_1(%arg0: i32, %arg1: i32, %arg2: i32) -> (i32, i32) {
    %c0_i32 = arith.constant 0 : i32
    return %arg2, %arg1 : i32, i32
  }
  func.func @transform_2(%arg0: i32, %arg1: i32, %arg2: i32) -> (i32, i32) {
    %c0_i32 = arith.constant 0 : i32
    %c0_i32_0 = arith.constant 0 : i32
    return %c0_i32, %arg1 : i32, i32
  }
  func.func @transform_3(%arg0: i32, %arg1: i32, %arg2: i32) -> (i32, i32) {
    %c0_i32 = arith.constant 0 : i32
    return %arg0, %arg1 : i32, i32
  }
}

</mosaic_0001>

<llo_original>
// kernel: tpu_custom_call.1
$region0: #{tpu_custom_call.1}
  #allocation0 [shape = 'u32[]', space=smem, size = 0x4, offset = 0x4, fixed_abs, tag = 'smem constant byte address 0x4 - core index']
  #allocation1 [shape = 'u32[144,128]{1,0:T(1,128)}', space=vmem, size = 0x12000, scoped, tag = 'internal scratch']
  #allocation2 [shape = 'f32[12,16]{1,0:T(8,128)}', space=vmem, size = 0x2000, scoped, tag = 'scratch operand']
  %s0 = inlined_call_operand.vmem [shape: f32[12,6], index: 0, kind: input, shape index: {}]
  %s1 = inlined_call_operand.vmem [shape: f32[6,16], index: 1, kind: input, shape index: {}]
  %s2 = inlined_call_operand.vmem [shape: f32[1,16], index: 2, kind: input, shape index: {}]
  %s3 = inlined_call_operand.hbm [shape: f32[12,16], index: 3, kind: output, shape index: {}]
  %s4 = sld [smem:[#allocation0]]
  $region30: #{tpu_custom_call.1} parent=0
    _
  %s6 = ssub.s32 1, %s4
  %s7 = scalar_select 0, %s6, %s4
  $region1: #{tpu_custom_call.1} parent=0
    #allocation3 [shape = 'u8[8192]{0}', space=vmem, size = 0x2000, scoped, tag = 'output window, operand 0, single buffered']
    #allocation4 [shape = 's32[1]{0}', space=sflag, size = 0x4, scoped, tag = 'scoped memory for tpu_custom_call.1']
    %8 = vsyncpa [#allocation4], 0
    // Predicated region
    $region2: #{tpu_custom_call.1} parent=1 // pred_check
      _
    $region3: #{tpu_custom_call.1} parent=1 // pred_check_branch
      %10 = sbr.rel (0) target = $region5
    $region4: #{tpu_custom_call.1} parent=1 // pred_region
      _
    $region5: #{tpu_custom_call.1} parent=1 // pred_fallthru
      _
    // Predicated region
    $region6: #{tpu_custom_call.1} parent=1 // pred_check
      _
    $region7: #{tpu_custom_call.1} parent=1 // pred_check_branch
      %12 = sbr.rel (0) target = $region9
    $region8: #{tpu_custom_call.1} parent=1 // pred_region
      _
    $region9: #{tpu_custom_call.1} parent=1 // pred_fallthru
      _
    // Predicated region
    $region10: #{tpu_custom_call.1} parent=1 // pred_check
      _
    $region11: #{tpu_custom_call.1} parent=1 // pred_check_branch
      %14 = sbr.rel (0) target = $region13
    $region12: #{tpu_custom_call.1} parent=1 // pred_region
      _
    $region13: #{tpu_custom_call.1} parent=1 // pred_fallthru
      _
    %p15 = scmp.eq.s32.totalorder 0, 0
    // Predicated region
    $region14: #{tpu_custom_call.1} parent=1 // pred_check
      %p16 = pneg %p15
    $region15: #{tpu_custom_call.1} parent=1 // pred_check_branch
      %18 = sbr.rel (%p16) target = $region17
    $region16: #{tpu_custom_call.1} parent=1 // pred_region
      %vm19 = vcmask 130048
      %20 = vst.msk [vmem:[#allocation2] sm:$0xff] %vm19, 0.0
      %vm21 = vcmask 125952
      %22 = vst.msk [vmem:[#allocation2 + $0x8] sm:$0xf] %vm21, 0.0
    $region17: #{tpu_custom_call.1} parent=1 // pred_fallthru
      _
    %v23 = vld [vmem:[#allocation2] sm:$0xff]
    %v24 = vld [vmem:[#allocation2 + $0x8] sm:$0xf]
    %v25 = vld [vmem:[%s0] sm:$0xff]
    %v26 = vld [vmem:[%s0 + $0x8] sm:$0xf]
    %v27 = vld [vmem:[%s1] sm:$0x3f]
    %vm28 = vcmask 48128
    %v30 = vsel %vm28, %v25, 0
    %v33 = vsel %vm28, %v26, 0
    %vm35 = vcmask 1045504
    %v37 = vsel %vm35, %v27, 0
    %39 = vmatprep.subr.mxu0 0.0
    %40 = vmatpush1.msra.mxu0 %v37
    %41 = vmatprep.subr.mxu0 0.0
    %42 = vmatpush1.msra.mxu0 0.0
    %43 = vmatprep.subr.mxu0 0.0
    %44 = vmatpush1.msra.mxu0 0.0
    %45 = vmatprep.subr.mxu0 0.0
    %46 = vmatpush1.msra.mxu0 0.0
    %47 = vmatprep.subr.mxu0 0.0
    %48 = vmatpush1.msra.mxu0 0.0
    %49 = vmatprep.subr.mxu0 0.0
    %50 = vmatpush1.msra.mxu0 0.0
    %51 = vmatprep.subr.mxu0 0.0
    %52 = vmatpush1.msra.mxu0 0.0
    %53 = vmatprep.subr.mxu0 0.0
    %54 = vmatpush1.msra.mxu0 0.0
    %55 = vmatprep.subr.mxu0 0.0
    %56 = vmatpush1.msra.mxu0 0.0
    %57 = vmatprep.subr.mxu0 0.0
    %58 = vmatpush1.msra.mxu0 0.0
    %59 = vmatprep.subr.mxu0 0.0
    %60 = vmatpush1.msra.mxu0 0.0
    %61 = vmatprep.subr.mxu0 0.0
    %62 = vmatpush1.msra.mxu0 0.0
    %63 = vmatprep.subr.mxu0 0.0
    %64 = vmatpush1.msra.mxu0 0.0
    %65 = vmatprep.subr.mxu0 0.0
    %66 = vmatpush1.msra.mxu0 0.0
    %67 = vmatprep.subr.mxu0 0.0
    %68 = vmatpush1.msra.mxu0 0.0
    %69 = vmatprep.subr.mxu0 0.0
    %70 = vmatpush1.msra.mxu0 0.0
    %71 = vmatprep.subr.mxu0 0.0
    %72 = vmatpush1.msra.mxu0 0.0
    %73 = vmatprep.subr.mxu0 0.0
    %74 = vmatpush1.msra.mxu0 0.0
    %75 = vmatprep.subr.mxu0 0.0
    %76 = vmatpush1.msra.mxu0 0.0
    %77 = vmatprep.subr.mxu0 0.0
    %78 = vmatpush1.msra.mxu0 0.0
    %79 = vmatprep.subr.mxu0 0.0
    %80 = vmatpush1.msra.mxu0 0.0
    %81 = vmatprep.subr.mxu0 0.0
    %82 = vmatpush1.msra.mxu0 0.0
    %83 = vmatprep.subr.mxu0 0.0
    %84 = vmatpush1.msra.mxu0 0.0
    %85 = vmatprep.subr.mxu0 0.0
    %86 = vmatpush1.msra.mxu0 0.0
    %87 = vmatprep.subr.mxu0 0.0
    %88 = vmatpush1.msra.mxu0 0.0
    %89 = vmatprep.subr.mxu0 0.0
    %90 = vmatpush1.msra.mxu0 0.0
    %91 = vmatprep.subr.mxu0 0.0
    %92 = vmatpush1.msra.mxu0 0.0
    %93 = vmatprep.subr.mxu0 0.0
    %94 = vmatpush1.msra.mxu0 0.0
    %95 = vmatprep.subr.mxu0 0.0
    %96 = vmatpush1.msra.mxu0 0.0
    %97 = vmatprep.subr.mxu0 0.0
    %98 = vmatpush1.msra.mxu0 0.0
    %99 = vmatprep.subr.mxu0 0.0
    %100 = vmatpush1.msra.mxu0 0.0
    %101 = vmatprep.subr.mxu0 0.0
    %102 = vmatpush1.msra.mxu0 0.0
    %103 = vmatprep.mubr.f32.mxu0 0.0
    %104 = vmatmul.mubr.f32.gmra.mrb[0].mxu0 %v30
    %v105 = vpop.f32.mrb[0].mxu0
    %v106 = vadd.f32 0.0, %v105
    %v107 = vpop.f32.mrb[0].mxu0
    %108 = vmatprep.mubr.f32.mxu0 0.0
    %109 = vmatmul.mubr.f32.gmra.mrb[0].mxu0 %v33
    %v110 = vpop.f32.mrb[0].mxu0
    %v111 = vadd.f32 0.0, %v110
    %v112 = vpop.f32.mrb[0].mxu0
    %113 = vdwg.mxu0
    %v114 = vadd.f32 %v23, %v106
    %v115 = vadd.f32 %v24, %v111
    %vm116 = vcmask 130048
    %117 = vst.msk [vmem:[#allocation2] sm:$0xff] %vm116, %v114
    %vm118 = vcmask 125952
    %119 = vst.msk [vmem:[#allocation2 + $0x8] sm:$0xf] %vm118, %v115
    // Predicated region
    $region18: #{tpu_custom_call.1} parent=1 // pred_check
      %p120 = pneg %p15
    $region19: #{tpu_custom_call.1} parent=1 // pred_check_branch
      %122 = sbr.rel (%p120) target = $region21
    $region20: #{tpu_custom_call.1} parent=1 // pred_region
      %v123 = vld [vmem:[#allocation2] sm:$0xff]
      %v124 = vld [vmem:[#allocation2 + $0x8] sm:$0xf]
      %v125 = vld [vmem:[%s2] sm:$0x1]
      %v127 = vlaneseq
      %v128 = vshrl.u32 %v127, 7
      %v129 = vsub.s32 0, %v128
      %v130 = vrot.slane %v125, %v129
      %v132 = vadd.f32 %v123, %v130
      %v133 = vadd.f32 %v124, %v130
      %134 = vst.msk [vmem:[#allocation3] sm:$0xff] %vm116, %v132
      %135 = vst.msk [vmem:[#allocation3 + $0x8] sm:$0xf] %vm118, %v133
    $region21: #{tpu_custom_call.1} parent=1 // pred_fallthru
      _
    // Predicated region
    $region22: #{tpu_custom_call.1} parent=1 // pred_check
      _
    $region23: #{tpu_custom_call.1} parent=1 // pred_check_branch
      %137 = sbr.rel (0) target = $region25
    $region24: #{tpu_custom_call.1} parent=1 // pred_region
      %s139 = ssub.s32 256, 256
      %140 = vsyncadd [#allocation4], %s139
      %s141 = sshll.u32 [#allocation3], 4
      %s142 = int_to_ptr.vmem [resolvable:$true] %s141
      %147 = dma.vmem_to_hbm [thread:$0]  %s142, 256, %s3, [#allocation4], 128, 128, 8
    $region25: #{tpu_custom_call.1} parent=1 // pred_fallthru
      _
    // Predicated region
    $region26: #{tpu_custom_call.1} parent=1 // pred_check
      _
    $region27: #{tpu_custom_call.1} parent=1 // pred_check_branch
      %149 = sbr.rel (0) target = $region29
    $region28: #{tpu_custom_call.1} parent=1 // pred_region
      %150 = dma.done [#allocation4], 256
    $region29: #{tpu_custom_call.1} parent=1 // pred_fallthru
      _
    %151 = vsyncpa [#allocation4], 1

</llo_original>
